<compile_context>
chip_gen: v7x
topology: tpu7x:2x2x1
jax: 0.10.0
libtpu: 0.0.40
codegen_flags: <defaults>
</compile_context>

<pallas_src>
import jax
import jax.numpy as jnp
from jax import lax
from jax.experimental import pallas as pl
from jax.experimental.pallas import tpu as pltpu


def _round_up(x, m):
    return ((x + m - 1) // m) * m


# ----------------------------------------------------------------------------
# Fused kernel: avg/max pool (spatial on lanes) + fc1 + ReLU + fc2 + add + sigmoid
# ----------------------------------------------------------------------------
def _make_channel_attention_kernel(hw, ts, lanes, needs_mask):
    inv_hw = 1.0 / float(hw)
    n_sub = ts // lanes  # static number of 128-lane sub-blocks per tile

    def kernel(x_ref, w1_ref, w2_ref, o_ref, sum_acc, max_acc):
        # x_ref: (1, C, TS)   w1_ref: (Ch, C)   w2_ref: (C, Ch)   o_ref: (1, C, 1)
        # sum_acc / max_acc: (C, lanes) f32
        j = pl.program_id(1)
        nj = pl.num_programs(1)

        @pl.when(j == 0)
        def _init():
            sum_acc[...] = jnp.zeros_like(sum_acc)
            max_acc[...] = jnp.full_like(max_acc, -jnp.inf)

        x = x_ref[0].astype(jnp.float32)  # (C, TS)

        def accumulate(masked):
            s = sum_acc[...]
            m = max_acc[...]
            for k in range(n_sub):
                blk = x[:, k * lanes:(k + 1) * lanes]  # (C, lanes) static slice
                if masked:
                    cols = (j * ts + k * lanes
                            + lax.broadcasted_iota(jnp.int32, (1, lanes), 1))
                    valid = cols < hw
                    s = s + jnp.where(valid, blk, 0.0)
                    m = jnp.maximum(m, jnp.where(valid, blk, -jnp.inf))
                else:
                    s = s + blk
                    m = jnp.maximum(m, blk)
            sum_acc[...] = s
            max_acc[...] = m

        if needs_mask:
            is_tail = j == nj - 1

            @pl.when(jnp.logical_not(is_tail))
            def _fast():
                accumulate(False)

            @pl.when(is_tail)
            def _tail():
                accumulate(True)
        else:
            accumulate(False)

        @pl.when(j == nj - 1)
        def _finish():
            # single cross-lane reduce (XLU), once per batch
            avg = jnp.sum(sum_acc[...], axis=-1, keepdims=True) * inv_hw  # (C, 1)
            mx = jnp.max(max_acc[...], axis=-1, keepdims=True)            # (C, 1)

            def mlp(v):  # v: (C, 1) -> (C, 1)
                h = jnp.maximum(
                    jnp.dot(w1_ref[...], v,
                            preferred_element_type=jnp.float32), 0.0)     # (Ch, 1)
                return jnp.dot(w2_ref[...], h,
                               preferred_element_type=jnp.float32)        # (C, 1)

            out = jax.nn.sigmoid(mlp(avg) + mlp(mx))                      # (C, 1)
            o_ref[0] = out.astype(o_ref.dtype)

    return kernel


def channel_attention_forward(x_nchw, fc1_w, fc2_w, *,
                              ts_max=4096, vmem_input_budget=8 << 20):
    """ChannelAttention forward.

    x_nchw: (B, C, H, W); fc1_w: (C//ratio, C, 1, 1); fc2_w: (C, C//ratio, 1, 1).
    Returns (B, C, 1, 1), matching the PyTorch module.
    """
    B, C, H, W = x_nchw.shape
    Ch = fc1_w.shape[0]
    HW = H * W

    # free reshape: spatial on the trailing (lane) axis, channels on sublanes
    x = x_nchw.reshape(B, C, HW)

    # spatial tiling: lane-dense, large chunks, capped by a VMEM double-buffer budget
    itemsize = jnp.dtype(x_nchw.dtype).itemsize
    if HW < 128:
        ts = HW
        lanes = HW
    else:
        cap = max(128, ((vmem_input_budget // (2 * C * itemsize)) // 128) * 128)
        ts = min(_round_up(HW, 128), ts_max, cap)
        lanes = 128
    n_chunks = pl.cdiv(HW, ts)
    needs_mask = (HW % ts) != 0          # ragged last block: mask, never pad

    # 1x1 conv weights, used directly with channels on sublanes
    w1 = fc1_w[:, :, 0, 0]               # (Ch, C)
    w2 = fc2_w[:, :, 0, 0]               # (C, Ch)

    kernel = _make_channel_attention_kernel(HW, ts, lanes, needs_mask)

    out = pl.pallas_call(
        kernel,
        out_shape=jax.ShapeDtypeStruct((B, C, 1), x_nchw.dtype),
        grid_spec=pltpu.PrefetchScalarGridSpec(
            num_scalar_prefetch=0,
            grid=(B, n_chunks),                       # reduction axis last
            in_specs=[
                pl.BlockSpec((1, C, ts), lambda b, j: (b, 0, j)),
                pl.BlockSpec((Ch, C), lambda b, j: (0, 0)),
                pl.BlockSpec((C, Ch), lambda b, j: (0, 0)),
            ],
            out_specs=pl.BlockSpec((1, C, 1), lambda b, j: (b, 0, 0)),
            scratch_shapes=[
                pltpu.VMEM((C, lanes), jnp.float32),  # sum accumulator
                pltpu.VMEM((C, lanes), jnp.float32),  # max accumulator
            ],
        ),
        compiler_params=pltpu.CompilerParams(
            dimension_semantics=("parallel", "arbitrary")),
    )(x, w1, w2)

    return out.reshape(B, C, 1, 1)


# ----------------------------------------------------------------------------
# Plain-JAX reference (mirrors the PyTorch module exactly)
# ----------------------------------------------------------------------------
def reference_forward(x, fc1_w, fc2_w):
    W1 = fc1_w[:, :, 0, 0]     # (Ch, C)
    W2 = fc2_w[:, :, 0, 0]     # (C, Ch)

    def mlp(v):                # v: (B, C)
        return jnp.maximum(v @ W1.T, 0.0) @ W2.T

    avg = jnp.mean(x, axis=(2, 3))
    mx = jnp.max(x, axis=(2, 3))
    out = jax.nn.sigmoid(mlp(avg) + mlp(mx))
    return out[:, :, None, None]


# ----------------------------------------------------------------------------
# Deterministic parameter init (shapes from ChannelAttention.__init__, ratio=16)
# ----------------------------------------------------------------------------
def init_params(key, in_planes, ratio=16):
    ch = in_planes // ratio
    k1, k2 = jax.random.split(key)
    fc1_w = (0.1 * jax.random.normal(k1, (ch, in_planes, 1, 1))).astype(jnp.float32)
    fc2_w = (0.1 * jax.random.normal(k2, (in_planes, ch, 1, 1))).astype(jnp.float32)
    return fc1_w, fc2_w


if __name__ == "__main__":
    key = jax.random.PRNGKey(0)
    kx, kp = jax.random.split(key)

    B, C, H, W = 2, 64, 16, 16          # ratio=16 -> hidden channels = 4
    x = jax.random.normal(kx, (B, C, H, W), dtype=jnp.float32)
    fc1_w, fc2_w = init_params(kp, C)

    out = jax.jit(channel_attention_forward)(x, fc1_w, fc2_w)
    out = jax.block_until_ready(out)

    ref = reference_forward(x, fc1_w, fc2_w)
    assert out.shape == (B, C, 1, 1), out.shape
    if not jnp.allclose(out, ref, atol=1e-5, rtol=1e-5):
        raise SystemExit(
            f"mismatch: max abs err {float(jnp.max(jnp.abs(out - ref)))}")
    print("KERNEL_OK")
</pallas_src>

<mosaic_0001>
module attributes {stable_mosaic.version = 11 : i64} {
  func.func @kernel(%arg0: i32, %arg1: i32, %arg2: memref<1x64x256xf32, #tpu.memory_space<vmem>>, %arg3: memref<4x64xf32, #tpu.memory_space<vmem>>, %arg4: memref<64x4xf32, #tpu.memory_space<vmem>>, %arg5: memref<1x64x1xf32, #tpu.memory_space<vmem>>, %arg6: memref<64x128xf32, #tpu.memory_space<vmem>>, %arg7: memref<64x128xf32, #tpu.memory_space<vmem>>) attributes {dimension_semantics = [#tpu.dimension_semantics<parallel>, #tpu.dimension_semantics<arbitrary>], iteration_bounds = array<i64: 2, 1>, scalar_prefetch = 0 : i64, scratch_operands = 2 : i64, tpu.core_type = #tpu.core_type<tc>, window_params = [{transform_indices = @transform_0, window_bounds = array<i64: 1, 64, 256>}, {pipeline_mode = #tpu.pipeline_mode<synchronous>, transform_indices = @transform_1, window_bounds = array<i64: 4, 64>}, {pipeline_mode = #tpu.pipeline_mode<synchronous>, transform_indices = @transform_2, window_bounds = array<i64: 64, 4>}, {transform_indices = @transform_3, window_bounds = array<i64: 1, 64, 1>}]} {
    %c0_i32 = arith.constant 0 : i32
    %0 = arith.cmpi eq, %arg1, %c0_i32 : i32
    %1 = arith.extui %0 : i1 to i32
    %c0_i32_0 = arith.constant 0 : i32
    %2 = arith.cmpi ne, %1, %c0_i32_0 : i32
    scf.if %2 {
      %cst = arith.constant 0.000000e+00 : f32
      %18 = vector.broadcast %cst : f32 to vector<64x128xf32>
      %c0_13 = arith.constant 0 : index
      %c0_14 = arith.constant 0 : index
      %19 = vector.load %arg6[%c0_13, %c0_14] : memref<64x128xf32, #tpu.memory_space<vmem>>, vector<64x128xf32>
      tpu.vector_store %arg6[%c0_13, %c0_14], %18 {strides = array<i32>} : memref<64x128xf32, #tpu.memory_space<vmem>>, vector<64x128xf32>,
      %cst_15 = arith.constant 0xFF800000 : f32
      %20 = vector.broadcast %cst_15 : f32 to vector<64x128xf32>
      %c0_16 = arith.constant 0 : index
      %c0_17 = arith.constant 0 : index
      %21 = vector.load %arg7[%c0_16, %c0_17] : memref<64x128xf32, #tpu.memory_space<vmem>>, vector<64x128xf32>
      tpu.vector_store %arg7[%c0_16, %c0_17], %20 {strides = array<i32>} : memref<64x128xf32, #tpu.memory_space<vmem>>, vector<64x128xf32>,
    } else {
    }
    %c0 = arith.constant 0 : index
    %c0_1 = arith.constant 0 : index
    %c0_2 = arith.constant 0 : index
    %3 = vector.load %arg2[%c0, %c0_1, %c0_2] : memref<1x64x256xf32, #tpu.memory_space<vmem>>, vector<1x64x256xf32>
    %4 = vector.shape_cast %3 : vector<1x64x256xf32> to vector<64x256xf32>
    %c0_3 = arith.constant 0 : index
    %c0_4 = arith.constant 0 : index
    %5 = vector.load %arg6[%c0_3, %c0_4] : memref<64x128xf32, #tpu.memory_space<vmem>>, vector<64x128xf32>
    %c0_5 = arith.constant 0 : index
    %c0_6 = arith.constant 0 : index
    %6 = vector.load %arg7[%c0_5, %c0_6] : memref<64x128xf32, #tpu.memory_space<vmem>>, vector<64x128xf32>
    %7 = vector.extract_strided_slice %4 {offsets = [0, 0], sizes = [64, 128], strides = [1, 1]} : vector<64x256xf32> to vector<64x128xf32>
    %8 = arith.addf %5, %7 : vector<64x128xf32>
    %9 = arith.maximumf %6, %7 : vector<64x128xf32>
    %10 = vector.extract_strided_slice %4 {offsets = [0, 128], sizes = [64, 128], strides = [1, 1]} : vector<64x256xf32> to vector<64x128xf32>
    %11 = arith.addf %8, %10 : vector<64x128xf32>
    %12 = arith.maximumf %9, %10 : vector<64x128xf32>
    %c0_7 = arith.constant 0 : index
    %c0_8 = arith.constant 0 : index
    %13 = vector.load %arg6[%c0_7, %c0_8] : memref<64x128xf32, #tpu.memory_space<vmem>>, vector<64x128xf32>
    tpu.vector_store %arg6[%c0_7, %c0_8], %11 {strides = array<i32>} : memref<64x128xf32, #tpu.memory_space<vmem>>, vector<64x128xf32>,
    %c0_9 = arith.constant 0 : index
    %c0_10 = arith.constant 0 : index
    %14 = vector.load %arg7[%c0_9, %c0_10] : memref<64x128xf32, #tpu.memory_space<vmem>>, vector<64x128xf32>
    tpu.vector_store %arg7[%c0_9, %c0_10], %12 {strides = array<i32>} : memref<64x128xf32, #tpu.memory_space<vmem>>, vector<64x128xf32>,
    %c0_i32_11 = arith.constant 0 : i32
    %15 = arith.cmpi eq, %arg1, %c0_i32_11 : i32
    %16 = arith.extui %15 : i1 to i32
    %c0_i32_12 = arith.constant 0 : i32
    %17 = arith.cmpi ne, %16, %c0_i32_12 : i32
    scf.if %17 {
      %c0_13 = arith.constant 0 : index
      %c0_14 = arith.constant 0 : index
      %18 = vector.load %arg6[%c0_13, %c0_14] : memref<64x128xf32, #tpu.memory_space<vmem>>, vector<64x128xf32>
      %cst = arith.constant dense<0.000000e+00> : vector<64xf32>
      %19 = vector.multi_reduction <add>, %18, %cst [1] : vector<64x128xf32> to vector<64xf32>
      %20 = vector.shape_cast %19 : vector<64xf32> to vector<64x1xf32>
      %cst_15 = arith.constant 3.906250e-03 : f32
      %21 = vector.broadcast %cst_15 : f32 to vector<64x1xf32>
      %22 = arith.mulf %20, %21 : vector<64x1xf32>
      %c0_16 = arith.constant 0 : index
      %c0_17 = arith.constant 0 : index
      %23 = vector.load %arg7[%c0_16, %c0_17] : memref<64x128xf32, #tpu.memory_space<vmem>>, vector<64x128xf32>
      %cst_18 = arith.constant dense<0xFF800000> : vector<64xf32>
      %24 = vector.multi_reduction <maximumf>, %23, %cst_18 [1] : vector<64x128xf32> to vector<64xf32>
      %25 = vector.shape_cast %24 : vector<64xf32> to vector<64x1xf32>
      %c0_19 = arith.constant 0 : index
      %c0_20 = arith.constant 0 : index
      %26 = vector.load %arg3[%c0_19, %c0_20] : memref<4x64xf32, #tpu.memory_space<vmem>>, vector<4x64xf32>
      %cst_21 = arith.constant dense<0.000000e+00> : vector<4x1xf32>
      %27 = tpu.matmul %26, %22, %cst_21 {dimension_numbers = #tpu.dot_dimension_numbers<[1], [0], [0], [1], [0, 0, 1, 1], [], []>} : vector<4x64xf32>, vector<64x1xf32>, vector<4x1xf32> -> vector<4x1xf32>
      %cst_22 = arith.constant 0.000000e+00 : f32
      %28 = vector.broadcast %cst_22 : f32 to vector<4x1xf32>
      %29 = arith.maximumf %27, %28 : vector<4x1xf32>
      %c0_23 = arith.constant 0 : index
      %c0_24 = arith.constant 0 : index
      %30 = vector.load %arg4[%c0_23, %c0_24] : memref<64x4xf32, #tpu.memory_space<vmem>>, vector<64x4xf32>
      %cst_25 = arith.constant dense<0.000000e+00> : vector<64x1xf32>
      %31 = tpu.matmul %30, %29, %cst_25 {dimension_numbers = #tpu.dot_dimension_numbers<[1], [0], [0], [1], [0, 0, 1, 1], [], []>} : vector<64x4xf32>, vector<4x1xf32>, vector<64x1xf32> -> vector<64x1xf32>
      %c0_26 = arith.constant 0 : index
      %c0_27 = arith.constant 0 : index
      %32 = vector.load %arg3[%c0_26, %c0_27] : memref<4x64xf32, #tpu.memory_space<vmem>>, vector<4x64xf32>
      %cst_28 = arith.constant dense<0.000000e+00> : vector<4x1xf32>
      %33 = tpu.matmul %32, %25, %cst_28 {dimension_numbers = #tpu.dot_dimension_numbers<[1], [0], [0], [1], [0, 0, 1, 1], [], []>} : vector<4x64xf32>, vector<64x1xf32>, vector<4x1xf32> -> vector<4x1xf32>
      %cst_29 = arith.constant 0.000000e+00 : f32
      %34 = vector.broadcast %cst_29 : f32 to vector<4x1xf32>
      %35 = arith.maximumf %33, %34 : vector<4x1xf32>
      %c0_30 = arith.constant 0 : index
      %c0_31 = arith.constant 0 : index
      %36 = vector.load %arg4[%c0_30, %c0_31] : memref<64x4xf32, #tpu.memory_space<vmem>>, vector<64x4xf32>
      %cst_32 = arith.constant dense<0.000000e+00> : vector<64x1xf32>
      %37 = tpu.matmul %36, %35, %cst_32 {dimension_numbers = #tpu.dot_dimension_numbers<[1], [0], [0], [1], [0, 0, 1, 1], [], []>} : vector<64x4xf32>, vector<4x1xf32>, vector<64x1xf32> -> vector<64x1xf32>
      %38 = arith.addf %31, %37 : vector<64x1xf32>
      %39 = arith.negf %38 : vector<64x1xf32>
      %40 = math.exp %39 : vector<64x1xf32>
      %cst_33 = arith.constant 1.000000e+00 : f32
      %41 = vector.broadcast %cst_33 : f32 to vector<64x1xf32>
      %42 = arith.addf %41, %40 : vector<64x1xf32>
      %43 = arith.divf %41, %42 : vector<64x1xf32>
      %c0_34 = arith.constant 0 : index
      %c0_35 = arith.constant 0 : index
      %c0_36 = arith.constant 0 : index
      %44 = vector.load %arg5[%c0_34, %c0_35, %c0_36] : memref<1x64x1xf32, #tpu.memory_space<vmem>>, vector<1x64x1xf32>
      %45 = vector.shape_cast %44 : vector<1x64x1xf32> to vector<64x1xf32>
      %46 = vector.shape_cast %43 : vector<64x1xf32> to vector<1x64x1xf32>
      tpu.vector_store %arg5[%c0_34, %c0_35, %c0_36], %46 {strides = array<i32>} : memref<1x64x1xf32, #tpu.memory_space<vmem>>, vector<1x64x1xf32>,
    } else {
    }
    return
  }
  func.func @transform_0(%arg0: i32, %arg1: i32) -> (i32, i32, i32) {
    %c0_i32 = arith.constant 0 : i32
    %c0_i32_0 = arith.constant 0 : i32
    return %arg0, %c0_i32, %arg1 : i32, i32, i32
  }
  func.func @transform_1(%arg0: i32, %arg1: i32) -> (i32, i32) {
    %c0_i32 = arith.constant 0 : i32
    %c0_i32_0 = arith.constant 0 : i32
    %c0_i32_1 = arith.constant 0 : i32
    return %c0_i32, %c0_i32_0 : i32, i32
  }
  func.func @transform_2(%arg0: i32, %arg1: i32) -> (i32, i32) {
    %c0_i32 = arith.constant 0 : i32
    %c0_i32_0 = arith.constant 0 : i32
    %c0_i32_1 = arith.constant 0 : i32
    return %c0_i32, %c0_i32_0 : i32, i32
  }
  func.func @transform_3(%arg0: i32, %arg1: i32) -> (i32, i32, i32) {
    %c0_i32 = arith.constant 0 : i32
    %c0_i32_0 = arith.constant 0 : i32
    %c0_i32_1 = arith.constant 0 : i32
    return %arg0, %c0_i32, %c0_i32_0 : i32, i32, i32
  }
}

</mosaic_0001>

<llo_original>
// kernel: channel_attention_forward.1
$region0: #{channel_attention_forward.1}
  #allocation0 [shape = 'u32[]', space=smem, size = 0x4, offset = 0x4, fixed_abs, tag = 'smem constant byte address 0x4 - core index']
  #allocation1 [shape = 'u32[144,128]{1,0:T(1,128)}', space=vmem, size = 0x12000, scoped, tag = 'internal scratch']
  #allocation2 [shape = 'f32[64,128]{1,0:T(8,128)}', space=vmem, size = 0x8000, scoped, tag = 'scratch operand']
  #allocation3 [shape = 'f32[64,128]{1,0:T(8,128)}', space=vmem, size = 0x8000, scoped, tag = 'scratch operand']
  %s0 = inlined_call_operand.vmem [shape: f32[2,64,256], index: 0, kind: input, shape index: {}]
  %s1 = inlined_call_operand.vmem [shape: f32[4,64], index: 1, kind: input, shape index: {}]
  %s2 = inlined_call_operand.vmem [shape: f32[64,4], index: 2, kind: input, shape index: {}]
  %s3 = inlined_call_operand.vmem [shape: f32[2,64,1], index: 3, kind: output, shape index: {}]
  %s4 = sld [smem:[#allocation0]]
  $region53: #{channel_attention_forward.1} parent=0
    _
  %s6 = ssub.s32 1, %s4
  %s7 = scalar_select 0, %s6, %s4
  loop: start=0, step=1, limit=4
  $region2: #{channel_attention_forward.1} parent=0 // loop_pre_header
    _
  $region3: #{channel_attention_forward.1} parent=0 // loop_header
    %s9 = sphi 0, %s13
    %p10 = scmp.ge.s32.totalorder %s9, 4
    %s16 = sphi 0, %s28
    %s17 = sphi 0, %s24
    %s18 = sphi 0, %s16
    %s19 = sphi 0, %s17
    %s20 = sphi 0, %s18
    %s21 = sphi 0, %s19
    %s33 = sphi 0, %s35
    %s36 = sphi 0, %s33
    %s37 = sphi 0, %s36
    %s53 = sphi 0, %s37
    %s57 = sphi 0, %s57
    %s59 = sphi 0, %s57
    %s60 = sphi 0, %s59
    %s74 = sphi 0, %s60
    %s78 = sphi 0, %s78
    %s80 = sphi 0, %s78
    %s81 = sphi 0, %s80
    %s95 = sphi 0, %s81
    %s101 = sphi 0, %s103
    %s104 = sphi 0, %s101
    %s105 = sphi 0, %s104
    %s121 = sphi 0, %s105
  $region4: #{channel_attention_forward.1} parent=0 // loop_header_branch
    %12 = sbr.rel (%p10) target = $region8
  $region5: #{channel_attention_forward.1} parent=0 // loop_body
    %s14 = ssub.s32 %s9, 1
    %s15 = ssub.s32 %s9, 2
    %s22 = sadd.s32 1, %s17
    %p23 = scmp.ge.s32.totalorder %s22, 1
    %s24 = scalar_select %p23, 0, %s22
    %s25 = sadd.s32 1, %s16
    %s26 = scalar_select %p23, %s25, %s16
    %p27 = scmp.ge.s32.totalorder %s26, 2
    %s28 = scalar_select %p27, 0, %s26
    %s29 = ssub.s32 %s16, %s28
    %s30 = ssub.s32 %s17, %s24
    %s31 = sor.u32 %s29, %s30
    %p32 = scmp.eq.s32.totalorder %s31, 0
    %s34 = sadd.s32 %s33, 1
    %s35 = scalar_select %p32, %s33, %s34
    %p38 = pneg %p32
    %p39 = scmp.eq.s32.totalorder %s9, 1
    %p40 = por %p38, %p39
    %p41 = scmp.ne.s32.totalorder %s33, %s36
    %p42 = scmp.eq.s32.totalorder %s9, 0
    %p43 = por %p41, %p42
    %p44 = scmp.ne.s32.totalorder %s33, %s36
    %p45 = scmp.eq.s32.totalorder %s14, 1
    %p46 = por %p44, %p45
    %p47 = scmp.ne.s32.totalorder %s36, %s37
    %p48 = scmp.eq.s32.totalorder %s14, 0
    %p49 = por %p47, %p48
    %p50 = scmp.ne.s32.totalorder %s36, %s37
    %p51 = scmp.eq.s32.totalorder %s15, 1
    %p52 = por %p50, %p51
    %p54 = scmp.ne.s32.totalorder %s37, %s53
    %p55 = scmp.eq.s32.totalorder %s15, 0
    %p56 = por %p54, %p55
    %s58 = sadd.s32 %s57, 1
    %p61 = scmp.eq.s32.totalorder %s9, 1
    %p62 = scmp.ne.s32.totalorder %s57, %s59
    %p63 = scmp.eq.s32.totalorder %s9, 0
    %p64 = por %p62, %p63
    %p65 = scmp.ne.s32.totalorder %s57, %s59
    %p66 = scmp.eq.s32.totalorder %s14, 1
    %p67 = por %p65, %p66
    %p68 = scmp.ne.s32.totalorder %s59, %s60
    %p69 = scmp.eq.s32.totalorder %s14, 0
    %p70 = por %p68, %p69
    %p71 = scmp.ne.s32.totalorder %s59, %s60
    %p72 = scmp.eq.s32.totalorder %s15, 1
    %p73 = por %p71, %p72
    %p75 = scmp.ne.s32.totalorder %s60, %s74
    %p76 = scmp.eq.s32.totalorder %s15, 0
    %p77 = por %p75, %p76
    %s79 = sadd.s32 %s78, 1
    %p82 = scmp.eq.s32.totalorder %s9, 1
    %p83 = scmp.ne.s32.totalorder %s78, %s80
    %p84 = scmp.eq.s32.totalorder %s9, 0
    %p85 = por %p83, %p84
    %p86 = scmp.ne.s32.totalorder %s78, %s80
    %p87 = scmp.eq.s32.totalorder %s14, 1
    %p88 = por %p86, %p87
    %p89 = scmp.ne.s32.totalorder %s80, %s81
    %p90 = scmp.eq.s32.totalorder %s14, 0
    %p91 = por %p89, %p90
    %p92 = scmp.ne.s32.totalorder %s80, %s81
    %p93 = scmp.eq.s32.totalorder %s15, 1
    %p94 = por %p92, %p93
    %p96 = scmp.ne.s32.totalorder %s81, %s95
    %p97 = scmp.eq.s32.totalorder %s15, 0
    %p98 = por %p96, %p97
    %s99 = ssub.s32 %s16, %s28
    %p100 = scmp.eq.s32.totalorder %s99, 0
    %s102 = sadd.s32 %s101, 1
    %s103 = scalar_select %p100, %s101, %s102
    %p106 = pneg %p100
    %p107 = scmp.eq.s32.totalorder %s9, 1
    %p108 = por %p106, %p107
    %p109 = scmp.ne.s32.totalorder %s101, %s104
    %p110 = scmp.eq.s32.totalorder %s9, 0
    %p111 = por %p109, %p110
    %p112 = scmp.ne.s32.totalorder %s101, %s104
    %p113 = scmp.eq.s32.totalorder %s14, 1
    %p114 = por %p112, %p113
    %p115 = scmp.ne.s32.totalorder %s104, %s105
    %p116 = scmp.eq.s32.totalorder %s14, 0
    %p117 = por %p115, %p116
    %p118 = scmp.ne.s32.totalorder %s104, %s105
    %p119 = scmp.eq.s32.totalorder %s15, 1
    %p120 = por %p118, %p119
    %p122 = scmp.ne.s32.totalorder %s105, %s121
    %p123 = scmp.eq.s32.totalorder %s15, 0
    %p124 = por %p122, %p123
    %p125 = scmp.le.s32.totalorder 1, %s9
    %p126 = scmp.lt.s32.totalorder %s9, 3
    %p127 = pnand %p125, %p126
    %p128 = pneg %p127
    // Predicated region
    $region9: #{channel_attention_forward.1} parent=5 // pred_check
      _
    $region10: #{channel_attention_forward.1} parent=5 // pred_check_branch
      %130 = sbr.rel (%p127) target = $region12
    $region11: #{channel_attention_forward.1} parent=5 // pred_region
      %s131 = ssub.s32 %s9, 1
      // Predicated region
      $region13: #{channel_attention_forward.1} parent=11 // pred_check
        %p132 = pneg %p70
      $region14: #{channel_attention_forward.1} parent=11 // pred_check_branch
        %134 = sbr.rel (%p132) target = $region16
      $region15: #{channel_attention_forward.1} parent=11 // pred_region
        _
      $region16: #{channel_attention_forward.1} parent=11 // pred_fallthru
        _
      // Predicated region
      $region17: #{channel_attention_forward.1} parent=11 // pred_check
        %p135 = pneg %p91
      $region18: #{channel_attention_forward.1} parent=11 // pred_check_branch
        %137 = sbr.rel (%p135) target = $region20
      $region19: #{channel_attention_forward.1} parent=11 // pred_region
        _
      $region20: #{channel_attention_forward.1} parent=11 // pred_fallthru
        _
    $region12: #{channel_attention_forward.1} parent=5 // pred_fallthru
      _
    %p138 = scmp.lt.s32.totalorder %s9, 2
    // Predicated region
    $region21: #{channel_attention_forward.1} parent=5 // pred_check
      %p139 = pneg %p138
    $region22: #{channel_attention_forward.1} parent=5 // pred_check_branch
      %141 = sbr.rel (%p139) target = $region24
    $region23: #{channel_attention_forward.1} parent=5 // pred_region
      // Predicated region
      $region25: #{channel_attention_forward.1} parent=23 // pred_check
        %p142 = pneg %p43
      $region26: #{channel_attention_forward.1} parent=23 // pred_check_branch
        %144 = sbr.rel (%p142) target = $region28
      $region27: #{channel_attention_forward.1} parent=23 // pred_region
        %s145 = smul.u32 2, %s17
        %p146 = scmp.lt.s32.totalorder %s16, 1
        %s147 = scalar_select %p146, %s16, 1
        %p148 = scmp.lt.s32.totalorder %s145, 1
        %s149 = scalar_select %p148, %s145, 1
        %s150 = smul.addr %s147, 16
        %s151 = sadd.s32 %s149, %s150
        %s152 = smul.addr %s151, 8
        %s153 = scalar_lea.vmem %s0, %s152
        %s154 = smul.u32 2, %s17
      $region28: #{channel_attention_forward.1} parent=23 // pred_fallthru
        _
    $region24: #{channel_attention_forward.1} parent=5 // pred_fallthru
      _
    %p155 = scmp.le.s32.totalorder 1, %s9
    %p156 = scmp.lt.s32.totalorder %s9, 3
    %p157 = pnand %p155, %p156
    %p158 = pneg %p157
    // Predicated region
    $region29: #{channel_attention_forward.1} parent=5 // pred_check
      _
    $region30: #{channel_attention_forward.1} parent=5 // pred_check_branch
      %160 = sbr.rel (%p157) target = $region32
    $region31: #{channel_attention_forward.1} parent=5 // pred_region
      %s161 = ssub.s32 %s9, 1
      %s162 = smul.u32 2, %s19
      %p163 = scmp.lt.s32.totalorder %s18, 1
      %s164 = scalar_select %p163, %s18, 1
      %p165 = scmp.lt.s32.totalorder %s162, 1
      %s166 = scalar_select %p165, %s162, 1
      %s167 = smul.addr %s164, 16
      %s168 = sadd.s32 %s166, %s167
      %s169 = smul.addr %s168, 8
      %s170 = scalar_lea.vmem %s0, %s169
      %p171 = pneg %p49
      %p172 = pneg %p46
      %p173 = pneg %p70
      %p174 = pneg %p67
      %p175 = pneg %p91
      %p176 = pneg %p88
      %p177 = pneg %p117
      %p178 = pneg %p114
      %p179 = scmp.lt.s32.totalorder %s18, 1
      %s180 = scalar_select %p179, %s18, 1
      %s181 = smul.addr %s180, 8
      %s182 = smul.addr %s181, 8
      %s183 = scalar_lea.vmem %s3, %s182
      %s184 = smul.u32 2, %s19
      %p185 = scmp.lt.s32.totalorder %s18, 1
      %s186 = scalar_select %p185, %s18, 1
      %p187 = scmp.lt.s32.totalorder %s184, 1
      %s188 = scalar_select %p187, %s184, 1
      %s189 = smul.addr %s186, 16
      %s190 = sadd.s32 %s188, %s189
      %s191 = smul.addr %s190, 8
      %s192 = scalar_lea.vmem %s0, %s191
      %s193 = smul.u32 2, %s19
      %p194 = scmp.lt.s32.totalorder %s18, 1
      %s195 = scalar_select %p194, %s18, 1
      %s196 = smul.addr %s195, 8
      %s197 = smul.addr %s196, 8
      %s198 = scalar_lea.vmem %s3, %s197
      %p199 = scmp.eq.s32.totalorder %s19, 0
      // Predicated region
      $region33: #{channel_attention_forward.1} parent=31 // pred_check
        %p200 = pneg %p199
      $region34: #{channel_attention_forward.1} parent=31 // pred_check_branch
        %202 = sbr.rel (%p200) target = $region36
      $region35: #{channel_attention_forward.1} parent=31 // pred_region
        %203 = vst [vmem:[#allocation2] sm:$0xff] 0.0
        %204 = vst [vmem:[#allocation2 + $0x8] sm:$0xff] 0.0
        %205 = vst [vmem:[#allocation2 + $0x10] sm:$0xff] 0.0
        %206 = vst [vmem:[#allocation2 + $0x18] sm:$0xff] 0.0
        %207 = vst [vmem:[#allocation2 + $0x20] sm:$0xff] 0.0
        %208 = vst [vmem:[#allocation2 + $0x28] sm:$0xff] 0.0
        %209 = vst [vmem:[#allocation2 + $0x30] sm:$0xff] 0.0
        %210 = vst [vmem:[#allocation2 + $0x38] sm:$0xff] 0.0
        %211 = vst [vmem:[#allocation3] sm:$0xff] -inf
        %212 = vst [vmem:[#allocation3 + $0x8] sm:$0xff] -inf
        %213 = vst [vmem:[#allocation3 + $0x10] sm:$0xff] -inf
        %214 = vst [vmem:[#allocation3 + $0x18] sm:$0xff] -inf
        %215 = vst [vmem:[#allocation3 + $0x20] sm:$0xff] -inf
        %216 = vst [vmem:[#allocation3 + $0x28] sm:$0xff] -inf
        %217 = vst [vmem:[#allocation3 + $0x30] sm:$0xff] -inf
        %218 = vst [vmem:[#allocation3 + $0x38] sm:$0xff] -inf
      $region36: #{channel_attention_forward.1} parent=31 // pred_fallthru
        _
      %v219 = vld [vmem:[%s192] sm:$0xff]
      %v220 = vld [vmem:[%s192 + $0x8] sm:$0xff]
      %v221 = vld [vmem:[%s192 + $0x10] sm:$0xff]
      %v222 = vld [vmem:[%s192 + $0x18] sm:$0xff]
      %v223 = vld [vmem:[%s192 + $0x20] sm:$0xff]
      %v224 = vld [vmem:[%s192 + $0x28] sm:$0xff]
      %v225 = vld [vmem:[%s192 + $0x30] sm:$0xff]
      %v226 = vld [vmem:[%s192 + $0x38] sm:$0xff]
      %v227 = vld [vmem:[%s192 + $0x40] sm:$0xff]
      %v228 = vld [vmem:[%s192 + $0x48] sm:$0xff]
      %v229 = vld [vmem:[%s192 + $0x50] sm:$0xff]
      %v230 = vld [vmem:[%s192 + $0x58] sm:$0xff]
      %v231 = vld [vmem:[%s192 + $0x60] sm:$0xff]
      %v232 = vld [vmem:[%s192 + $0x68] sm:$0xff]
      %v233 = vld [vmem:[%s192 + $0x70] sm:$0xff]
      %v234 = vld [vmem:[%s192 + $0x78] sm:$0xff]
      %v235 = vld [vmem:[#allocation2] sm:$0xff]
      %v236 = vld [vmem:[#allocation2 + $0x8] sm:$0xff]
      %v237 = vld [vmem:[#allocation2 + $0x10] sm:$0xff]
      %v238 = vld [vmem:[#allocation2 + $0x18] sm:$0xff]
      %v239 = vld [vmem:[#allocation2 + $0x20] sm:$0xff]
      %v240 = vld [vmem:[#allocation2 + $0x28] sm:$0xff]
      %v241 = vld [vmem:[#allocation2 + $0x30] sm:$0xff]
      %v242 = vld [vmem:[#allocation2 + $0x38] sm:$0xff]
      %v243 = vld [vmem:[#allocation3] sm:$0xff]
      %v244 = vld [vmem:[#allocation3 + $0x8] sm:$0xff]
      %v245 = vld [vmem:[#allocation3 + $0x10] sm:$0xff]
      %v246 = vld [vmem:[#allocation3 + $0x18] sm:$0xff]
      %v247 = vld [vmem:[#allocation3 + $0x20] sm:$0xff]
      %v248 = vld [vmem:[#allocation3 + $0x28] sm:$0xff]
      %v249 = vld [vmem:[#allocation3 + $0x30] sm:$0xff]
      %v250 = vld [vmem:[#allocation3 + $0x38] sm:$0xff]
      %v251 = vadd.f32 %v235, %v219
      %v252 = vadd.f32 %v236, %v221
      %v253 = vadd.f32 %v237, %v223
      %v254 = vadd.f32 %v238, %v225
      %v255 = vadd.f32 %v239, %v227
      %v256 = vadd.f32 %v240, %v229
      %v257 = vadd.f32 %v241, %v231
      %v258 = vadd.f32 %v242, %v233
      %v259 = vmax.f32 %v243, %v219
      %v260 = vmax.f32 %v244, %v221
      %v261 = vmax.f32 %v245, %v223
      %v262 = vmax.f32 %v246, %v225
      %v263 = vmax.f32 %v247, %v227
      %v264 = vmax.f32 %v248, %v229
      %v265 = vmax.f32 %v249, %v231
      %v266 = vmax.f32 %v250, %v233
      %v267 = vadd.f32 %v251, %v220
      %v268 = vadd.f32 %v252, %v222
      %v269 = vadd.f32 %v253, %v224
      %v270 = vadd.f32 %v254, %v226
      %v271 = vadd.f32 %v255, %v228
      %v272 = vadd.f32 %v256, %v230
      %v273 = vadd.f32 %v257, %v232
      %v274 = vadd.f32 %v258, %v234
      %v275 = vmax.f32 %v259, %v220
      %v276 = vmax.f32 %v260, %v222
      %v277 = vmax.f32 %v261, %v224
      %v278 = vmax.f32 %v262, %v226
      %v279 = vmax.f32 %v263, %v228
      %v280 = vmax.f32 %v264, %v230
      %v281 = vmax.f32 %v265, %v232
      %v282 = vmax.f32 %v266, %v234
      %283 = vst [vmem:[#allocation2] sm:$0xff] %v267
      %284 = vst [vmem:[#allocation2 + $0x8] sm:$0xff] %v268
      %285 = vst [vmem:[#allocation2 + $0x10] sm:$0xff] %v269
      %286 = vst [vmem:[#allocation2 + $0x18] sm:$0xff] %v270
      %287 = vst [vmem:[#allocation2 + $0x20] sm:$0xff] %v271
      %288 = vst [vmem:[#allocation2 + $0x28] sm:$0xff] %v272
      %289 = vst [vmem:[#allocation2 + $0x30] sm:$0xff] %v273
      %290 = vst [vmem:[#allocation2 + $0x38] sm:$0xff] %v274
      %291 = vst [vmem:[#allocation3] sm:$0xff] %v275
      %292 = vst [vmem:[#allocation3 + $0x8] sm:$0xff] %v276
      %293 = vst [vmem:[#allocation3 + $0x10] sm:$0xff] %v277
      %294 = vst [vmem:[#allocation3 + $0x18] sm:$0xff] %v278
      %295 = vst [vmem:[#allocation3 + $0x20] sm:$0xff] %v279
      %296 = vst [vmem:[#allocation3 + $0x28] sm:$0xff] %v280
      %297 = vst [vmem:[#allocation3 + $0x30] sm:$0xff] %v281
      %298 = vst [vmem:[#allocation3 + $0x38] sm:$0xff] %v282
      // Predicated region
      $region37: #{channel_attention_forward.1} parent=31 // pred_check
        %p299 = pneg %p199
      $region38: #{channel_attention_forward.1} parent=31 // pred_check_branch
        %301 = sbr.rel (%p299) target = $region40
      $region39: #{channel_attention_forward.1} parent=31 // pred_region
        %v302 = vld [vmem:[#allocation2] sm:$0xff]
        %v303 = vld [vmem:[#allocation2 + $0x8] sm:$0xff]
        %v304 = vld [vmem:[#allocation2 + $0x10] sm:$0xff]
        %v305 = vld [vmem:[#allocation2 + $0x18] sm:$0xff]
        %v306 = vld [vmem:[#allocation2 + $0x20] sm:$0xff]
        %v307 = vld [vmem:[#allocation2 + $0x28] sm:$0xff]
        %v308 = vld [vmem:[#allocation2 + $0x30] sm:$0xff]
        %v309 = vld [vmem:[#allocation2 + $0x38] sm:$0xff]
        %310 = vadd.xlane.f32.xlu0 %v302
        %v311 = vpop.xlane.xlu0 %310
        %312 = vadd.xlane.f32.xlu0 %v303
        %v313 = vpop.xlane.xlu0 %312
        %314 = vadd.xlane.f32.xlu0 %v304
        %v315 = vpop.xlane.xlu0 %314
        %316 = vadd.xlane.f32.xlu0 %v305
        %v317 = vpop.xlane.xlu0 %316
        %318 = vadd.xlane.f32.xlu0 %v306
        %v319 = vpop.xlane.xlu0 %318
        %320 = vadd.xlane.f32.xlu0 %v307
        %v321 = vpop.xlane.xlu0 %320
        %322 = vadd.xlane.f32.xlu0 %v308
        %v323 = vpop.xlane.xlu0 %322
        %324 = vadd.xlane.f32.xlu0 %v309
        %v325 = vpop.xlane.xlu0 %324
        %v326 = vmul.f32 %v311, 0.00390625
        %v327 = vmul.f32 %v313, 0.00390625
        %v328 = vmul.f32 %v315, 0.00390625
        %v329 = vmul.f32 %v317, 0.00390625
        %v330 = vmul.f32 %v319, 0.00390625
        %v331 = vmul.f32 %v321, 0.00390625
        %v332 = vmul.f32 %v323, 0.00390625
        %v333 = vmul.f32 %v325, 0.00390625
        %v334 = vld [vmem:[#allocation3] sm:$0xff]
        %v335 = vld [vmem:[#allocation3 + $0x8] sm:$0xff]
        %v336 = vld [vmem:[#allocation3 + $0x10] sm:$0xff]
        %v337 = vld [vmem:[#allocation3 + $0x18] sm:$0xff]
        %v338 = vld [vmem:[#allocation3 + $0x20] sm:$0xff]
        %v339 = vld [vmem:[#allocation3 + $0x28] sm:$0xff]
        %v340 = vld [vmem:[#allocation3 + $0x30] sm:$0xff]
        %v341 = vld [vmem:[#allocation3 + $0x38] sm:$0xff]
        %342 = vmax.xlane.f32.xlu0 %v334
        %v343 = vpop.xlane.xlu0 %342
        %344 = vmax.xlane.f32.xlu0 %v335
        %v345 = vpop.xlane.xlu0 %344
        %346 = vmax.xlane.f32.xlu0 %v336
        %v347 = vpop.xlane.xlu0 %346
        %348 = vmax.xlane.f32.xlu0 %v337
        %v349 = vpop.xlane.xlu0 %348
        %350 = vmax.xlane.f32.xlu0 %v338
        %v351 = vpop.xlane.xlu0 %350
        %352 = vmax.xlane.f32.xlu0 %v339
        %v353 = vpop.xlane.xlu0 %352
        %354 = vmax.xlane.f32.xlu0 %v340
        %v355 = vpop.xlane.xlu0 %354
        %356 = vmax.xlane.f32.xlu0 %v341
        %v357 = vpop.xlane.xlu0 %356
        %v358 = vld [vmem:[%s1] sm:$0xf]
        %vm359 = vcmask 523264
        %v361 = vsel %vm359, %v358, 0
        %363 = vmatprep.subr.mxu0 0.0
        %364 = vmatpush1.msra.mxu0 %v326
        %365 = vmatprep.subr.mxu0 0.0
        %366 = vmatpush1.msra.mxu0 %v327
        %367 = vmatprep.subr.mxu0 0.0
        %368 = vmatpush1.msra.mxu0 %v328
        %369 = vmatprep.subr.mxu0 0.0
        %370 = vmatpush1.msra.mxu0 %v329
        %371 = vmatprep.subr.mxu0 0.0
        %372 = vmatpush1.msra.mxu0 %v330
        %373 = vmatprep.subr.mxu0 0.0
        %374 = vmatpush1.msra.mxu0 %v331
        %375 = vmatprep.subr.mxu0 0.0
        %376 = vmatpush1.msra.mxu0 %v332
        %377 = vmatprep.subr.mxu0 0.0
        %378 = vmatpush1.msra.mxu0 %v333
        %379 = vmatprep.subr.mxu0 0.0
        %380 = vmatpush1.msra.mxu0 0.0
        %381 = vmatprep.subr.mxu0 0.0
        %382 = vmatpush1.msra.mxu0 0.0
        %383 = vmatprep.subr.mxu0 0.0
        %384 = vmatpush1.msra.mxu0 0.0
        %385 = vmatprep.subr.mxu0 0.0
        %386 = vmatpush1.msra.mxu0 0.0
        %387 = vmatprep.subr.mxu0 0.0
        %388 = vmatpush1.msra.mxu0 0.0
        %389 = vmatprep.subr.mxu0 0.0
        %390 = vmatpush1.msra.mxu0 0.0
        %391 = vmatprep.subr.mxu0 0.0
        %392 = vmatpush1.msra.mxu0 0.0
        %393 = vmatprep.subr.mxu0 0.0
        %394 = vmatpush1.msra.mxu0 0.0
        %395 = vmatprep.subr.mxu0 0.0
        %396 = vmatpush1.msra.mxu0 0.0
        %397 = vmatprep.subr.mxu0 0.0
        %398 = vmatpush1.msra.mxu0 0.0
        %399 = vmatprep.subr.mxu0 0.0
        %400 = vmatpush1.msra.mxu0 0.0
        %401 = vmatprep.subr.mxu0 0.0
        %402 = vmatpush1.msra.mxu0 0.0
        %403 = vmatprep.subr.mxu0 0.0
        %404 = vmatpush1.msra.mxu0 0.0
        %405 = vmatprep.subr.mxu0 0.0
        %406 = vmatpush1.msra.mxu0 0.0
        %407 = vmatprep.subr.mxu0 0.0
        %408 = vmatpush1.msra.mxu0 0.0
        %409 = vmatprep.subr.mxu0 0.0
        %410 = vmatpush1.msra.mxu0 0.0
        %411 = vmatprep.subr.mxu0 0.0
        %412 = vmatpush1.msra.mxu0 0.0
        %413 = vmatprep.subr.mxu0 0.0
        %414 = vmatpush1.msra.mxu0 0.0
        %415 = vmatprep.subr.mxu0 0.0
        %416 = vmatpush1.msra.mxu0 0.0
        %417 = vmatprep.subr.mxu0 0.0
        %418 = vmatpush1.msra.mxu0 0.0
        %419 = vmatprep.subr.mxu0 0.0
        %420 = vmatpush1.msra.mxu0 0.0
        %421 = vmatprep.subr.mxu0 0.0
        %422 = vmatpush1.msra.mxu0 0.0
        %423 = vmatprep.subr.mxu0 0.0
        %424 = vmatpush1.msra.mxu0 0.0
        %425 = vmatprep.subr.mxu0 0.0
        %426 = vmatpush1.msra.mxu0 0.0
        %427 = vmatprep.mubr.f32.mxu0 0.0
        %428 = vmatmul.mubr.f32.gmra.mrb[0].mxu0 %v361
        %v429 = vpop.f32.mrb[0].mxu0
        %v430 = vadd.f32 0.0, %v429
        %v431 = vpop.f32.mrb[0].mxu0
        %432 = vdwg.mxu0
        %v433 = vmax.f32 %v430, 0.0
        %v434 = vld [vmem:[%s2] sm:$0xff]
        %v435 = vld [vmem:[%s2 + $0x8] sm:$0xff]
        %v436 = vld [vmem:[%s2 + $0x10] sm:$0xff]
        %v437 = vld [vmem:[%s2 + $0x18] sm:$0xff]
        %v438 = vld [vmem:[%s2 + $0x20] sm:$0xff]
        %v439 = vld [vmem:[%s2 + $0x28] sm:$0xff]
        %v440 = vld [vmem:[%s2 + $0x30] sm:$0xff]
        %v441 = vld [vmem:[%s2 + $0x38] sm:$0xff]
        %442 = vmatprep.subr.mxu0 0.0
        %443 = vmatpush1.msra.mxu0 %v343
        %444 = vmatprep.subr.mxu0 0.0
        %445 = vmatpush1.msra.mxu0 %v345
        %446 = vmatprep.subr.mxu0 0.0
        %447 = vmatpush1.msra.mxu0 %v347
        %448 = vmatprep.subr.mxu0 0.0
        %449 = vmatpush1.msra.mxu0 %v349
        %450 = vmatprep.subr.mxu0 0.0
        %451 = vmatpush1.msra.mxu0 %v351
        %452 = vmatprep.subr.mxu0 0.0
        %453 = vmatpush1.msra.mxu0 %v353
        %454 = vmatprep.subr.mxu0 0.0
        %455 = vmatpush1.msra.mxu0 %v355
        %456 = vmatprep.subr.mxu0 0.0
        %457 = vmatpush1.msra.mxu0 %v357
        %458 = vmatprep.subr.mxu0 0.0
        %459 = vmatpush1.msra.mxu0 0.0
        %460 = vmatprep.subr.mxu0 0.0
        %461 = vmatpush1.msra.mxu0 0.0
        %462 = vmatprep.subr.mxu0 0.0
        %463 = vmatpush1.msra.mxu0 0.0
        %464 = vmatprep.subr.mxu0 0.0
        %465 = vmatpush1.msra.mxu0 0.0
        %466 = vmatprep.subr.mxu0 0.0
        %467 = vmatpush1.msra.mxu0 0.0
        %468 = vmatprep.subr.mxu0 0.0
        %469 = vmatpush1.msra.mxu0 0.0
        %470 = vmatprep.subr.mxu0 0.0
        %471 = vmatpush1.msra.mxu0 0.0
        %472 = vmatprep.subr.mxu0 0.0
        %473 = vmatpush1.msra.mxu0 0.0
        %474 = vmatprep.subr.mxu0 0.0
        %475 = vmatpush1.msra.mxu0 0.0
        %476 = vmatprep.subr.mxu0 0.0
        %477 = vmatpush1.msra.mxu0 0.0
        %478 = vmatprep.subr.mxu0 0.0
        %479 = vmatpush1.msra.mxu0 0.0
        %480 = vmatprep.subr.mxu0 0.0
        %481 = vmatpush1.msra.mxu0 0.0
        %482 = vmatprep.subr.mxu0 0.0
        %483 = vmatpush1.msra.mxu0 0.0
        %484 = vmatprep.subr.mxu0 0.0
        %485 = vmatpush1.msra.mxu0 0.0
        %486 = vmatprep.subr.mxu0 0.0
        %487 = vmatpush1.msra.mxu0 0.0
        %488 = vmatprep.subr.mxu0 0.0
        %489 = vmatpush1.msra.mxu0 0.0
        %490 = vmatprep.subr.mxu0 0.0
        %491 = vmatpush1.msra.mxu0 0.0
        %492 = vmatprep.subr.mxu0 0.0
        %493 = vmatpush1.msra.mxu0 0.0
        %494 = vmatprep.subr.mxu0 0.0
        %495 = vmatpush1.msra.mxu0 0.0
        %496 = vmatprep.subr.mxu0 0.0
        %497 = vmatpush1.msra.mxu0 0.0
        %498 = vmatprep.subr.mxu0 0.0
        %499 = vmatpush1.msra.mxu0 0.0
        %500 = vmatprep.subr.mxu0 0.0
        %501 = vmatpush1.msra.mxu0 0.0
        %502 = vmatprep.subr.mxu0 0.0
        %503 = vmatpush1.msra.mxu0 0.0
        %504 = vmatprep.subr.mxu0 0.0
        %505 = vmatpush1.msra.mxu0 0.0
        %506 = vmatprep.mubr.f32.mxu0 0.0
        %507 = vmatmul.mubr.f32.gmra.mrb[0].mxu0 %v361
        %v508 = vpop.f32.mrb[0].mxu0
        %v509 = vadd.f32 0.0, %v508
        %v510 = vpop.f32.mrb[0].mxu0
        %511 = vdwg.mxu0
        %v512 = vmax.f32 %v509, 0.0
        %vm513 = vcmask 31744
        %v515 = vsel %vm513, %v434, 0
        %v518 = vsel %vm513, %v435, 0
        %v521 = vsel %vm513, %v436, 0
        %v524 = vsel %vm513, %v437, 0
        %v527 = vsel %vm513, %v438, 0
        %v530 = vsel %vm513, %v439, 0
        %v533 = vsel %vm513, %v440, 0
        %v536 = vsel %vm513, %v441, 0
        %vm538 = vcmask 1043456
        %v540 = vsel %vm538, %v512, 0
        %542 = vmatprep.subr.mxu0 0.0
        %543 = vmatpush1.msra.mxu0 %v540
        %544 = vmatprep.subr.mxu0 0.0
        %545 = vmatpush1.msra.mxu0 0.0
        %546 = vmatprep.subr.mxu0 0.0
        %547 = vmatpush1.msra.mxu0 0.0
        %548 = vmatprep.subr.mxu0 0.0
        %549 = vmatpush1.msra.mxu0 0.0
        %550 = vmatprep.subr.mxu0 0.0
        %551 = vmatpush1.msra.mxu0 0.0
        %552 = vmatprep.subr.mxu0 0.0
        %553 = vmatpush1.msra.mxu0 0.0
        %554 = vmatprep.subr.mxu0 0.0
        %555 = vmatpush1.msra.mxu0 0.0
        %556 = vmatprep.subr.mxu0 0.0
        %557 = vmatpush1.msra.mxu0 0.0
        %558 = vmatprep.subr.mxu0 0.0
        %559 = vmatpush1.msra.mxu0 0.0
        %560 = vmatprep.subr.mxu0 0.0
        %561 = vmatpush1.msra.mxu0 0.0
        %562 = vmatprep.subr.mxu0 0.0
        %563 = vmatpush1.msra.mxu0 0.0
        %564 = vmatprep.subr.mxu0 0.0
        %565 = vmatpush1.msra.mxu0 0.0
        %566 = vmatprep.subr.mxu0 0.0
        %567 = vmatpush1.msra.mxu0 0.0
        %568 = vmatprep.subr.mxu0 0.0
        %569 = vmatpush1.msra.mxu0 0.0
        %570 = vmatprep.subr.mxu0 0.0
        %571 = vmatpush1.msra.mxu0 0.0
        %572 = vmatprep.subr.mxu0 0.0
        %573 = vmatpush1.msra.mxu0 0.0
        %574 = vmatprep.subr.mxu0 0.0
        %575 = vmatpush1.msra.mxu0 0.0
        %576 = vmatprep.subr.mxu0 0.0
        %577 = vmatpush1.msra.mxu0 0.0
        %578 = vmatprep.subr.mxu0 0.0
        %579 = vmatpush1.msra.mxu0 0.0
        %580 = vmatprep.subr.mxu0 0.0
        %581 = vmatpush1.msra.mxu0 0.0
        %582 = vmatprep.subr.mxu0 0.0
        %583 = vmatpush1.msra.mxu0 0.0
        %584 = vmatprep.subr.mxu0 0.0
        %585 = vmatpush1.msra.mxu0 0.0
        %586 = vmatprep.subr.mxu0 0.0
        %587 = vmatpush1.msra.mxu0 0.0
        %588 = vmatprep.subr.mxu0 0.0
        %589 = vmatpush1.msra.mxu0 0.0
        %590 = vmatprep.subr.mxu0 0.0
        %591 = vmatpush1.msra.mxu0 0.0
        %592 = vmatprep.subr.mxu0 0.0
        %593 = vmatpush1.msra.mxu0 0.0
        %594 = vmatprep.subr.mxu0 0.0
        %595 = vmatpush1.msra.mxu0 0.0
        %596 = vmatprep.subr.mxu0 0.0
        %597 = vmatpush1.msra.mxu0 0.0
        %598 = vmatprep.subr.mxu0 0.0
        %599 = vmatpush1.msra.mxu0 0.0
        %600 = vmatprep.subr.mxu0 0.0
        %601 = vmatpush1.msra.mxu0 0.0
        %602 = vmatprep.subr.mxu0 0.0
        %603 = vmatpush1.msra.mxu0 0.0
        %604 = vmatprep.subr.mxu0 0.0
        %605 = vmatpush1.msra.mxu0 0.0
        %606 = vmatprep.mubr.f32.mxu0 0.0
        %607 = vmatmul.mubr.f32.gmra.mrb[0].mxu0 %v515
        %v608 = vpop.f32.mrb[0].mxu0
        %v609 = vadd.f32 0.0, %v608
        %v610 = vpop.f32.mrb[0].mxu0
        %611 = vmatprep.mubr.f32.mxu0 0.0
        %612 = vmatmul.mubr.f32.gmra.mrb[0].mxu0 %v518
        %v613 = vpop.f32.mrb[0].mxu0
        %v614 = vadd.f32 0.0, %v613
        %v615 = vpop.f32.mrb[0].mxu0
        %616 = vmatprep.mubr.f32.mxu0 0.0
        %617 = vmatmul.mubr.f32.gmra.mrb[0].mxu0 %v521
        %v618 = vpop.f32.mrb[0].mxu0
        %v619 = vadd.f32 0.0, %v618
        %v620 = vpop.f32.mrb[0].mxu0
        %621 = vmatprep.mubr.f32.mxu0 0.0
        %622 = vmatmul.mubr.f32.gmra.mrb[0].mxu0 %v524
        %v623 = vpop.f32.mrb[0].mxu0
        %v624 = vadd.f32 0.0, %v623
        %v625 = vpop.f32.mrb[0].mxu0
        %626 = vmatprep.mubr.f32.mxu0 0.0
        %627 = vmatmul.mubr.f32.gmra.mrb[0].mxu0 %v527
        %v628 = vpop.f32.mrb[0].mxu0
        %v629 = vadd.f32 0.0, %v628
        %v630 = vpop.f32.mrb[0].mxu0
        %631 = vmatprep.mubr.f32.mxu0 0.0
        %632 = vmatmul.mubr.f32.gmra.mrb[0].mxu0 %v530
        %v633 = vpop.f32.mrb[0].mxu0
        %v634 = vadd.f32 0.0, %v633
        %v635 = vpop.f32.mrb[0].mxu0
        %636 = vmatprep.mubr.f32.mxu0 0.0
        %637 = vmatmul.mubr.f32.gmra.mrb[0].mxu0 %v533
        %v638 = vpop.f32.mrb[0].mxu0
        %v639 = vadd.f32 0.0, %v638
        %v640 = vpop.f32.mrb[0].mxu0
        %641 = vmatprep.mubr.f32.mxu0 0.0
        %642 = vmatmul.mubr.f32.gmra.mrb[0].mxu0 %v536
        %v643 = vpop.f32.mrb[0].mxu0
        %v644 = vadd.f32 0.0, %v643
        %v645 = vpop.f32.mrb[0].mxu0
        %646 = vdwg.mxu0
        %v648 = vsel %vm538, %v433, 0
        %650 = vmatprep.subr.mxu0 0.0
        %651 = vmatpush1.msra.mxu0 %v648
        %652 = vmatprep.subr.mxu0 0.0
        %653 = vmatpush1.msra.mxu0 0.0
        %654 = vmatprep.subr.mxu0 0.0
        %655 = vmatpush1.msra.mxu0 0.0
        %656 = vmatprep.subr.mxu0 0.0
        %657 = vmatpush1.msra.mxu0 0.0
        %658 = vmatprep.subr.mxu0 0.0
        %659 = vmatpush1.msra.mxu0 0.0
        %660 = vmatprep.subr.mxu0 0.0
        %661 = vmatpush1.msra.mxu0 0.0
        %662 = vmatprep.subr.mxu0 0.0
        %663 = vmatpush1.msra.mxu0 0.0
        %664 = vmatprep.subr.mxu0 0.0
        %665 = vmatpush1.msra.mxu0 0.0
        %666 = vmatprep.subr.mxu0 0.0
        %667 = vmatpush1.msra.mxu0 0.0
        %668 = vmatprep.subr.mxu0 0.0
        %669 = vmatpush1.msra.mxu0 0.0
        %670 = vmatprep.subr.mxu0 0.0
        %671 = vmatpush1.msra.mxu0 0.0
        %672 = vmatprep.subr.mxu0 0.0
        %673 = vmatpush1.msra.mxu0 0.0
        %674 = vmatprep.subr.mxu0 0.0
        %675 = vmatpush1.msra.mxu0 0.0
        %676 = vmatprep.subr.mxu0 0.0
        %677 = vmatpush1.msra.mxu0 0.0
        %678 = vmatprep.subr.mxu0 0.0
        %679 = vmatpush1.msra.mxu0 0.0
        %680 = vmatprep.subr.mxu0 0.0
        %681 = vmatpush1.msra.mxu0 0.0
        %682 = vmatprep.subr.mxu0 0.0
        %683 = vmatpush1.msra.mxu0 0.0
        %684 = vmatprep.subr.mxu0 0.0
        %685 = vmatpush1.msra.mxu0 0.0
        %686 = vmatprep.subr.mxu0 0.0
        %687 = vmatpush1.msra.mxu0 0.0
        %688 = vmatprep.subr.mxu0 0.0
        %689 = vmatpush1.msra.mxu0 0.0
        %690 = vmatprep.subr.mxu0 0.0
        %691 = vmatpush1.msra.mxu0 0.0
        %692 = vmatprep.subr.mxu0 0.0
        %693 = vmatpush1.msra.mxu0 0.0
        %694 = vmatprep.subr.mxu0 0.0
        %695 = vmatpush1.msra.mxu0 0.0
        %696 = vmatprep.subr.mxu0 0.0
        %697 = vmatpush1.msra.mxu0 0.0
        %698 = vmatprep.subr.mxu0 0.0
        %699 = vmatpush1.msra.mxu0 0.0
        %700 = vmatprep.subr.mxu0 0.0
        %701 = vmatpush1.msra.mxu0 0.0
        %702 = vmatprep.subr.mxu0 0.0
        %703 = vmatpush1.msra.mxu0 0.0
        %704 = vmatprep.subr.mxu0 0.0
        %705 = vmatpush1.msra.mxu0 0.0
        %706 = vmatprep.subr.mxu0 0.0
        %707 = vmatpush1.msra.mxu0 0.0
        %708 = vmatprep.subr.mxu0 0.0
        %709 = vmatpush1.msra.mxu0 0.0
        %710 = vmatprep.subr.mxu0 0.0
        %711 = vmatpush1.msra.mxu0 0.0
        %712 = vmatprep.subr.mxu0 0.0
        %713 = vmatpush1.msra.mxu0 0.0
        %714 = vmatprep.mubr.f32.mxu0 0.0
        %715 = vmatmul.mubr.f32.gmra.mrb[0].mxu0 %v515
        %v716 = vpop.f32.mrb[0].mxu0
        %v717 = vadd.f32 %v609, %v716
        %v718 = vpop.f32.mrb[0].mxu0
        %719 = vmatprep.mubr.f32.mxu0 0.0
        %720 = vmatmul.mubr.f32.gmra.mrb[0].mxu0 %v518
        %v721 = vpop.f32.mrb[0].mxu0
        %v722 = vadd.f32 %v614, %v721
        %v723 = vpop.f32.mrb[0].mxu0
        %724 = vmatprep.mubr.f32.mxu0 0.0
        %725 = vmatmul.mubr.f32.gmra.mrb[0].mxu0 %v521
        %v726 = vpop.f32.mrb[0].mxu0
        %v727 = vadd.f32 %v619, %v726
        %v728 = vpop.f32.mrb[0].mxu0
        %729 = vmatprep.mubr.f32.mxu0 0.0
        %730 = vmatmul.mubr.f32.gmra.mrb[0].mxu0 %v524
        %v731 = vpop.f32.mrb[0].mxu0
        %v732 = vadd.f32 %v624, %v731
        %v733 = vpop.f32.mrb[0].mxu0
        %734 = vmatprep.mubr.f32.mxu0 0.0
        %735 = vmatmul.mubr.f32.gmra.mrb[0].mxu0 %v527
        %v736 = vpop.f32.mrb[0].mxu0
        %v737 = vadd.f32 %v629, %v736
        %v738 = vpop.f32.mrb[0].mxu0
        %739 = vmatprep.mubr.f32.mxu0 0.0
        %740 = vmatmul.mubr.f32.gmra.mrb[0].mxu0 %v530
        %v741 = vpop.f32.mrb[0].mxu0
        %v742 = vadd.f32 %v634, %v741
        %v743 = vpop.f32.mrb[0].mxu0
        %744 = vmatprep.mubr.f32.mxu0 0.0
        %745 = vmatmul.mubr.f32.gmra.mrb[0].mxu0 %v533
        %v746 = vpop.f32.mrb[0].mxu0
        %v747 = vadd.f32 %v639, %v746
        %v748 = vpop.f32.mrb[0].mxu0
        %749 = vmatprep.mubr.f32.mxu0 0.0
        %750 = vmatmul.mubr.f32.gmra.mrb[0].mxu0 %v536
        %v751 = vpop.f32.mrb[0].mxu0
        %v752 = vadd.f32 %v644, %v751
        %v753 = vpop.f32.mrb[0].mxu0
        %754 = vdwg.mxu0
        %v755 = vxor.u32 %v717, 2147483648
        %v756 = vxor.u32 %v722, 2147483648
        %v757 = vxor.u32 %v727, 2147483648
        %v758 = vxor.u32 %v732, 2147483648
        %v759 = vxor.u32 %v737, 2147483648
        %v760 = vxor.u32 %v742, 2147483648
        %v761 = vxor.u32 %v747, 2147483648
        %v762 = vxor.u32 %v752, 2147483648
        %v763 = vmul.f32 %v755, 1.442695
        %v764 = vpow.pop %v763
        %v765 = vmul.f32 %v756, 1.442695
        %v766 = vpow.pop %v765
        %v767 = vmul.f32 %v757, 1.442695
        %v768 = vpow.pop %v767
        %v769 = vmul.f32 %v758, 1.442695
        %v770 = vpow.pop %v769
        %v771 = vmul.f32 %v759, 1.442695
        %v772 = vpow.pop %v771
        %v773 = vmul.f32 %v760, 1.442695
        %v774 = vpow.pop %v773
        %v775 = vmul.f32 %v761, 1.442695
        %v776 = vpow.pop %v775
        %v777 = vmul.f32 %v762, 1.442695
        %v778 = vpow.pop %v777
        %v779 = vadd.f32 %v764, 1.0
        %v780 = vadd.f32 %v766, 1.0
        %v781 = vadd.f32 %v768, 1.0
        %v782 = vadd.f32 %v770, 1.0
        %v783 = vadd.f32 %v772, 1.0
        %v784 = vadd.f32 %v774, 1.0
        %v785 = vadd.f32 %v776, 1.0
        %v786 = vadd.f32 %v778, 1.0
        %v787 = vrcp.pop %v779
        %v788 = vmul.f32 1.0, %v787
        %v789 = vrcp.pop %v780
        %v790 = vmul.f32 1.0, %v789
        %v791 = vrcp.pop %v781
        %v792 = vmul.f32 1.0, %v791
        %v793 = vrcp.pop %v782
        %v794 = vmul.f32 1.0, %v793
        %v795 = vrcp.pop %v783
        %v796 = vmul.f32 1.0, %v795
        %v797 = vrcp.pop %v784
        %v798 = vmul.f32 1.0, %v797
        %v799 = vrcp.pop %v785
        %v800 = vmul.f32 1.0, %v799
        %v801 = vrcp.pop %v786
        %v802 = vmul.f32 1.0, %v801
        %vm803 = vcmask 7168
        %804 = vst.msk [vmem:[%s198] sm:$0xff] %vm803, %v788
        %805 = vst.msk [vmem:[%s198 + $0x8] sm:$0xff] %vm803, %v790
        %806 = vst.msk [vmem:[%s198 + $0x10] sm:$0xff] %vm803, %v792
        %807 = vst.msk [vmem:[%s198 + $0x18] sm:$0xff] %vm803, %v794
        %808 = vst.msk [vmem:[%s198 + $0x20] sm:$0xff] %vm803, %v796
        %809 = vst.msk [vmem:[%s198 + $0x28] sm:$0xff] %vm803, %v798
        %810 = vst.msk [vmem:[%s198 + $0x30] sm:$0xff] %vm803, %v800
        %811 = vst.msk [vmem:[%s198 + $0x38] sm:$0xff] %vm803, %v802
      $region40: #{channel_attention_forward.1} parent=31 // pred_fallthru
        _
      %p812 = scmp.lt.s32.totalorder %s18, 1
      %s813 = scalar_select %p812, %s18, 1
      %s814 = smul.addr %s813, 8
      %s815 = smul.addr %s814, 8
      %s816 = scalar_lea.vmem %s3, %s815
      // Predicated region
      $region41: #{channel_attention_forward.1} parent=31 // pred_check
        %p817 = pneg %p114
      $region42: #{channel_attention_forward.1} parent=31 // pred_check_branch
        %819 = sbr.rel (%p817) target = $region44
      $region43: #{channel_attention_forward.1} parent=31 // pred_region
        _
      $region44: #{channel_attention_forward.1} parent=31 // pred_fallthru
        _
    $region32: #{channel_attention_forward.1} parent=5 // pred_fallthru
      _
    %p820 = scmp.le.s32.totalorder 2, %s9
    // Predicated region
    $region45: #{channel_attention_forward.1} parent=5 // pred_check
      %p821 = pneg %p820
    $region46: #{channel_attention_forward.1} parent=5 // pred_check_branch
      %823 = sbr.rel (%p821) target = $region48
    $region47: #{channel_attention_forward.1} parent=5 // pred_region
      %s824 = ssub.s32 %s9, 2
      // Predicated region
      $region49: #{channel_attention_forward.1} parent=47 // pred_check
        %p825 = pneg %p120
      $region50: #{channel_attention_forward.1} parent=47 // pred_check_branch
        %827 = sbr.rel (%p825) target = $region52
      $region51: #{channel_attention_forward.1} parent=47 // pred_region
        %p828 = scmp.lt.s32.totalorder %s20, 1
        %s829 = scalar_select %p828, %s20, 1
        %s830 = smul.addr %s829, 8
        %s831 = smul.addr %s830, 8
        %s832 = scalar_lea.vmem %s3, %s831
      $region52: #{channel_attention_forward.1} parent=47 // pred_fallthru
        _
    $region48: #{channel_attention_forward.1} parent=5 // pred_fallthru
      _
  $region6: #{channel_attention_forward.1} parent=0 // loop_footer
    %s13 = sadd.s32 1, %s9
  $region7: #{channel_attention_forward.1} parent=0 // loop_footer_branch
    %8 = sbr.rel target = $region3
  $region8: #{channel_attention_forward.1} parent=0 // loop_exit
    _

</llo_original>
